<compile_context>
chip_gen: v5e
topology: v5e:2x2
jax: 0.10.0
libtpu: 0.0.40
codegen_flags: <defaults>
</compile_context>

<pallas_src>
import jax
import jax.numpy as jnp
from jax.experimental import pallas as pl
from jax.experimental.pallas import tpu as pltpu


VMEM_SPEC = pl.BlockSpec(memory_space=pltpu.MemorySpace.VMEM)
SMEM_SPEC = pl.BlockSpec(memory_space=pltpu.MemorySpace.SMEM)


# ---------------------------------------------------------------------------
# Fused forward kernel
#   inputs : mask_count (SMEM), node, adj, weight, W_embed^T, rgnn W stack,
#            centroid^T, W_out^T, b_out        (all VMEM)
#   output : logits [1, num_class]
#   scratch: h [N, E], A_dense [N, N]          (VMEM, resident across layers)
# ---------------------------------------------------------------------------
def _fused_forward_kernel(cnt_ref, node_ref, adj_ref, wgt_ref,
                          w_embed_ref, rgnn_ws_ref, cent_ref, wout_ref,
                          bout_ref, out_ref, h_ref, a_ref):
    n = node_ref.shape[0]
    max_nb = adj_ref.shape[1]
    cnt = cnt_ref[0]

    # mask: first `cnt` nodes are real atoms (== arange(1, N+1) <= cnt)
    col_mask = (jax.lax.broadcasted_iota(jnp.int32, (n, 1), 0) < cnt
                ).astype(jnp.float32)                              # [N, 1]
    row_mask = (jax.lax.broadcasted_iota(jnp.int32, (1, n), 1) < cnt
                ).astype(jnp.float32)                              # [1, N]

    # Dense adjacency built once in VMEM (no XLA scatter, no N^2 HBM traffic):
    #   A[i, j] = sum_k weight[i, k] * [adj[i, k] == j]
    col_ids = jax.lax.broadcasted_iota(jnp.int32, (n, n), 1)
    adj = adj_ref[...]
    wgt = wgt_ref[...]
    a = jnp.zeros((n, n), jnp.float32)
    for k in range(max_nb):                                        # static unroll
        a = a + wgt[:, k:k + 1] * (adj[:, k:k + 1] == col_ids).astype(jnp.float32)
    a_ref[...] = a

    # masked embedding (euclidean embed_manifold branch)
    h_ref[...] = (
        jnp.dot(node_ref[...], w_embed_ref[...],
                preferred_element_type=jnp.float32)
        * col_mask
    )

    # rgnn layers: h stays resident in VMEM scratch, layers statically unrolled
    num_layers = rgnn_ws_ref.shape[0]
    for layer in range(num_layers):
        msg = (
            jnp.dot(h_ref[...], rgnn_ws_ref[layer],
                    preferred_element_type=jnp.float32)
            * col_mask                                             # keep msg-side mask
        )
        agg = jnp.dot(a_ref[...], msg, preferred_element_type=jnp.float32)
        h_ref[...] = jnp.tanh(agg) * col_mask

    # centroid-distance head + masked mean + output linear (all fused)
    x = h_ref[...]                                                 # [N, E]
    c_t = cent_ref[...]                                            # [E, C]
    x2 = jnp.sum(x * x, axis=-1, keepdims=True)                    # [N, 1]
    c2 = jnp.sum(c_t * c_t, axis=0, keepdims=True)                 # [1, C]
    xc = jnp.dot(x, c_t, preferred_element_type=jnp.float32)       # [N, C]
    dist = jnp.sqrt(jnp.maximum(x2 + c2 - 2.0 * xc, 0.0))          # [N, C] unmasked

    # row mask + node reduction folded into one tiny MXU op: [1,N] @ [N,C]
    graph_sum = jnp.dot(row_mask, dist, preferred_element_type=jnp.float32)
    den = jnp.maximum(jnp.sum(row_mask, axis=1, keepdims=True), 1.0)  # [1,1], /0 guard
    graph = graph_sum * pl.reciprocal(den, approx=False)           # EUP reciprocal

    out_ref[...] = (
        jnp.dot(graph, wout_ref[...], preferred_element_type=jnp.float32)
        + bout_ref[...]
    )
    # TODO(synk): num_class / C / E are lane-sparse (<128); pad or batch graphs
    # if the real workload is store-bound.


# ---------------------------------------------------------------------------
# Full forward: one pallas_call (squeeze + dtype glue only outside the kernel)
# ---------------------------------------------------------------------------
def graph_prediction_forward(node, adj, weight, mask_count, params):
    assert node.shape[0] == 1 and adj.shape[0] == 1 and weight.shape[0] == 1
    node = node[0].astype(jnp.float32)        # [N, F]
    adj = adj[0].astype(jnp.int32)            # [N, max_neighbor]
    weight = weight[0].astype(jnp.float32)    # [N, max_neighbor]
    n = adj.shape[0]
    e = params["w_embed_t"].shape[1]
    num_class = params["w_out_t"].shape[1]

    cnt = jnp.asarray(mask_count, jnp.int32).reshape(1)
    rgnn_ws = jnp.stack(params["rgnn_ws"], axis=0)    # [L, E, E]

    return pl.pallas_call(
        _fused_forward_kernel,
        out_shape=jax.ShapeDtypeStruct((1, num_class), jnp.float32),
        in_specs=[
            SMEM_SPEC,   # mask_count scalar
            VMEM_SPEC,   # node
            VMEM_SPEC,   # adj
            VMEM_SPEC,   # weight
            VMEM_SPEC,   # w_embed_t
            VMEM_SPEC,   # rgnn_ws stacked
            VMEM_SPEC,   # centroid_t
            VMEM_SPEC,   # w_out_t
            VMEM_SPEC,   # b_out
        ],
        out_specs=VMEM_SPEC,
        scratch_shapes=[
            pltpu.VMEM((n, e), jnp.float32),   # h, resident across rgnn layers
            pltpu.VMEM((n, n), jnp.float32),   # dense adjacency
        ],
        compiler_params=pltpu.CompilerParams(vmem_limit_bytes=32 * 1024 * 1024),
    )(cnt, node, adj, weight,
      params["w_embed_t"], rgnn_ws, params["centroid_t"],
      params["w_out_t"], params["b_out"])


# ---------------------------------------------------------------------------
# Pure-JAX reference for verification (gather-and-weighted-sum rgnn form)
# ---------------------------------------------------------------------------
def reference_forward(node, adj, weight, mask_count, params):
    node = node[0].astype(jnp.float32)
    adj = adj[0].astype(jnp.int32)
    weight = weight[0].astype(jnp.float32)
    n, max_nb = adj.shape
    mask = (jnp.arange(1, n + 1) <= mask_count).astype(jnp.float32).reshape(n, 1)

    h = (node @ params["w_embed_t"]) * mask
    for w_l in params["rgnn_ws"]:
        msg = (h @ w_l) * mask                           # [N, E]
        neigh = msg[adj.reshape(-1)].reshape(n, max_nb, -1)
        agg = jnp.sum(neigh * weight[..., None], axis=1)
        h = jnp.tanh(agg) * mask

    cent = params["centroid_t"].T                        # [C, E]
    diff = h[:, None, :] - cent[None, :, :]              # [N, C, E]
    dist = jnp.sqrt(jnp.sum(diff * diff, axis=-1)) * mask
    graph = jnp.sum(dist, axis=0, keepdims=True) / jnp.sum(mask)
    return graph @ params["w_out_t"] + params["b_out"]


# ---------------------------------------------------------------------------
if __name__ == "__main__":
    # small "args": num_feature=8, embed_size=32, gnn_layer=2,
    #               num_centroid=8, num_class=4, node_num=16, max_neighbor=4
    N, F, E, C, NUM_CLASS, MAX_NB, GNN_LAYERS = 16, 8, 32, 8, 4, 4, 2

    key = jax.random.PRNGKey(0)
    k_node, k_w, k_adj, k_we, k_r1, k_r2, k_c, k_o, k_b = jax.random.split(key, 9)

    # inputs (match the module's [1, node_num, ...] convention)
    node = jax.random.normal(k_node, (1, N, F), jnp.float32)
    adj = jax.random.randint(k_adj, (1, N, MAX_NB), 0, N, jnp.int32)
    weight = jax.random.uniform(k_we, (1, N, MAX_NB), jnp.float32)
    mask_count = jnp.int32(10)   # number of real atoms

    # deterministic parameters (shapes from __init__; stored pre-transposed)
    rkeys = [k_r1, k_r2][:GNN_LAYERS]
    params = {
        "w_embed_t": 0.1 * jax.random.normal(k_w, (F, E), jnp.float32),
        "rgnn_ws": [0.1 * jax.random.normal(k, (E, E), jnp.float32) for k in rkeys],
        "centroid_t": 0.1 * jax.random.normal(k_c, (E, C), jnp.float32),
        "w_out_t": 0.1 * jax.random.normal(k_o, (C, NUM_CLASS), jnp.float32),
        "b_out": 0.01 * jax.random.normal(k_b, (1, NUM_CLASS), jnp.float32),
    }

    out = graph_prediction_forward(node, adj, weight, mask_count, params)
    out = jax.block_until_ready(out)

    ref = reference_forward(node, adj, weight, mask_count, params)
    assert out.shape == (1, NUM_CLASS)
    assert jnp.allclose(out, ref, atol=1e-4, rtol=1e-4), (out, ref)

    print("KERNEL_OK")
</pallas_src>

<mosaic_0001>
module attributes {stable_mosaic.version = 11 : i64} {
  func.func @_fused_forward_kernel(%arg0: memref<1xi32, #tpu.memory_space<smem>>, %arg1: memref<16x8xf32, #tpu.memory_space<vmem>>, %arg2: memref<16x4xi32, #tpu.memory_space<vmem>>, %arg3: memref<16x4xf32, #tpu.memory_space<vmem>>, %arg4: memref<8x32xf32, #tpu.memory_space<vmem>>, %arg5: memref<2x32x32xf32, #tpu.memory_space<vmem>>, %arg6: memref<32x8xf32, #tpu.memory_space<vmem>>, %arg7: memref<8x4xf32, #tpu.memory_space<vmem>>, %arg8: memref<1x4xf32, #tpu.memory_space<vmem>>, %arg9: memref<1x4xf32, #tpu.memory_space<vmem>>, %arg10: memref<16x32xf32, #tpu.memory_space<vmem>>, %arg11: memref<16x16xf32, #tpu.memory_space<vmem>>) attributes {dimension_semantics = [], scalar_prefetch = 0 : i64, scratch_operands = 2 : i64, tpu.core_type = #tpu.core_type<tc>} {
    %c0 = arith.constant 0 : index
    %0 = memref.load %arg0[%c0] : memref<1xi32, #tpu.memory_space<smem>>
    %1 = tpu.iota {dimensions = array<i32: 0>} : vector<16x1xi32>
    %2 = vector.broadcast %0 : i32 to vector<16x1xi32>
    %3 = arith.cmpi slt, %1, %2 : vector<16x1xi32>
    %4 = arith.extui %3 : vector<16x1xi1> to vector<16x1xi32>
    %5 = arith.sitofp %4 : vector<16x1xi32> to vector<16x1xf32>
    %6 = tpu.iota {dimensions = array<i32: 1>} : vector<1x16xi32>
    %7 = vector.broadcast %0 : i32 to vector<1x16xi32>
    %8 = arith.cmpi slt, %6, %7 : vector<1x16xi32>
    %9 = arith.extui %8 : vector<1x16xi1> to vector<1x16xi32>
    %10 = arith.sitofp %9 : vector<1x16xi32> to vector<1x16xf32>
    %11 = tpu.iota {dimensions = array<i32: 1>} : vector<16x16xi32>
    %c0_0 = arith.constant 0 : index
    %c0_1 = arith.constant 0 : index
    %12 = vector.load %arg2[%c0_0, %c0_1] : memref<16x4xi32, #tpu.memory_space<vmem>>, vector<16x4xi32>
    %c0_2 = arith.constant 0 : index
    %c0_3 = arith.constant 0 : index
    %13 = vector.load %arg3[%c0_2, %c0_3] : memref<16x4xf32, #tpu.memory_space<vmem>>, vector<16x4xf32>
    %cst = arith.constant 0.000000e+00 : f32
    %14 = vector.broadcast %cst : f32 to vector<16x16xf32>
    %15 = vector.extract_strided_slice %13 {offsets = [0, 0], sizes = [16, 1], strides = [1, 1]} : vector<16x4xf32> to vector<16x1xf32>
    %16 = vector.extract_strided_slice %12 {offsets = [0, 0], sizes = [16, 1], strides = [1, 1]} : vector<16x4xi32> to vector<16x1xi32>
    %17 = vector.broadcast %16 : vector<16x1xi32> to vector<16x16xi32>
    %18 = arith.cmpi eq, %17, %11 : vector<16x16xi32>
    %19 = arith.extui %18 : vector<16x16xi1> to vector<16x16xi32>
    %20 = arith.sitofp %19 : vector<16x16xi32> to vector<16x16xf32>
    %21 = vector.broadcast %15 : vector<16x1xf32> to vector<16x16xf32>
    %22 = arith.mulf %21, %20 : vector<16x16xf32>
    %23 = arith.addf %14, %22 : vector<16x16xf32>
    %24 = vector.extract_strided_slice %13 {offsets = [0, 1], sizes = [16, 1], strides = [1, 1]} : vector<16x4xf32> to vector<16x1xf32>
    %25 = vector.extract_strided_slice %12 {offsets = [0, 1], sizes = [16, 1], strides = [1, 1]} : vector<16x4xi32> to vector<16x1xi32>
    %26 = vector.broadcast %25 : vector<16x1xi32> to vector<16x16xi32>
    %27 = arith.cmpi eq, %26, %11 : vector<16x16xi32>
    %28 = arith.extui %27 : vector<16x16xi1> to vector<16x16xi32>
    %29 = arith.sitofp %28 : vector<16x16xi32> to vector<16x16xf32>
    %30 = vector.broadcast %24 : vector<16x1xf32> to vector<16x16xf32>
    %31 = arith.mulf %30, %29 : vector<16x16xf32>
    %32 = arith.addf %23, %31 : vector<16x16xf32>
    %33 = vector.extract_strided_slice %13 {offsets = [0, 2], sizes = [16, 1], strides = [1, 1]} : vector<16x4xf32> to vector<16x1xf32>
    %34 = vector.extract_strided_slice %12 {offsets = [0, 2], sizes = [16, 1], strides = [1, 1]} : vector<16x4xi32> to vector<16x1xi32>
    %35 = vector.broadcast %34 : vector<16x1xi32> to vector<16x16xi32>
    %36 = arith.cmpi eq, %35, %11 : vector<16x16xi32>
    %37 = arith.extui %36 : vector<16x16xi1> to vector<16x16xi32>
    %38 = arith.sitofp %37 : vector<16x16xi32> to vector<16x16xf32>
    %39 = vector.broadcast %33 : vector<16x1xf32> to vector<16x16xf32>
    %40 = arith.mulf %39, %38 : vector<16x16xf32>
    %41 = arith.addf %32, %40 : vector<16x16xf32>
    %42 = vector.extract_strided_slice %13 {offsets = [0, 3], sizes = [16, 1], strides = [1, 1]} : vector<16x4xf32> to vector<16x1xf32>
    %43 = vector.extract_strided_slice %12 {offsets = [0, 3], sizes = [16, 1], strides = [1, 1]} : vector<16x4xi32> to vector<16x1xi32>
    %44 = vector.broadcast %43 : vector<16x1xi32> to vector<16x16xi32>
    %45 = arith.cmpi eq, %44, %11 : vector<16x16xi32>
    %46 = arith.extui %45 : vector<16x16xi1> to vector<16x16xi32>
    %47 = arith.sitofp %46 : vector<16x16xi32> to vector<16x16xf32>
    %48 = vector.broadcast %42 : vector<16x1xf32> to vector<16x16xf32>
    %49 = arith.mulf %48, %47 : vector<16x16xf32>
    %50 = arith.addf %41, %49 : vector<16x16xf32>
    %c0_4 = arith.constant 0 : index
    %c0_5 = arith.constant 0 : index
    %51 = vector.load %arg11[%c0_4, %c0_5] : memref<16x16xf32, #tpu.memory_space<vmem>>, vector<16x16xf32>
    tpu.vector_store %arg11[%c0_4, %c0_5], %50 {strides = array<i32>} : memref<16x16xf32, #tpu.memory_space<vmem>>, vector<16x16xf32>,
    %c0_6 = arith.constant 0 : index
    %c0_7 = arith.constant 0 : index
    %52 = vector.load %arg1[%c0_6, %c0_7] : memref<16x8xf32, #tpu.memory_space<vmem>>, vector<16x8xf32>
    %c0_8 = arith.constant 0 : index
    %c0_9 = arith.constant 0 : index
    %53 = vector.load %arg4[%c0_8, %c0_9] : memref<8x32xf32, #tpu.memory_space<vmem>>, vector<8x32xf32>
    %cst_10 = arith.constant dense<0.000000e+00> : vector<16x32xf32>
    %54 = tpu.matmul %52, %53, %cst_10 {dimension_numbers = #tpu.dot_dimension_numbers<[1], [0], [0], [1], [0, 0, 1, 1], [], []>} : vector<16x8xf32>, vector<8x32xf32>, vector<16x32xf32> -> vector<16x32xf32>
    %55 = vector.broadcast %5 : vector<16x1xf32> to vector<16x32xf32>
    %56 = arith.mulf %54, %55 : vector<16x32xf32>
    %c0_11 = arith.constant 0 : index
    %c0_12 = arith.constant 0 : index
    %57 = vector.load %arg10[%c0_11, %c0_12] : memref<16x32xf32, #tpu.memory_space<vmem>>, vector<16x32xf32>
    tpu.vector_store %arg10[%c0_11, %c0_12], %56 {strides = array<i32>} : memref<16x32xf32, #tpu.memory_space<vmem>>, vector<16x32xf32>,
    %c0_13 = arith.constant 0 : index
    %c0_14 = arith.constant 0 : index
    %58 = vector.load %arg10[%c0_13, %c0_14] : memref<16x32xf32, #tpu.memory_space<vmem>>, vector<16x32xf32>
    %c0_15 = arith.constant 0 : index
    %c0_16 = arith.constant 0 : index
    %c0_17 = arith.constant 0 : index
    %59 = vector.load %arg5[%c0_15, %c0_16, %c0_17] : memref<2x32x32xf32, #tpu.memory_space<vmem>>, vector<1x32x32xf32>
    %60 = vector.shape_cast %59 : vector<1x32x32xf32> to vector<32x32xf32>
    %cst_18 = arith.constant dense<0.000000e+00> : vector<16x32xf32>
    %61 = tpu.matmul %58, %60, %cst_18 {dimension_numbers = #tpu.dot_dimension_numbers<[1], [0], [0], [1], [0, 0, 1, 1], [], []>} : vector<16x32xf32>, vector<32x32xf32>, vector<16x32xf32> -> vector<16x32xf32>
    %62 = vector.broadcast %5 : vector<16x1xf32> to vector<16x32xf32>
    %63 = arith.mulf %61, %62 : vector<16x32xf32>
    %c0_19 = arith.constant 0 : index
    %c0_20 = arith.constant 0 : index
    %64 = vector.load %arg11[%c0_19, %c0_20] : memref<16x16xf32, #tpu.memory_space<vmem>>, vector<16x16xf32>
    %cst_21 = arith.constant dense<0.000000e+00> : vector<16x32xf32>
    %65 = tpu.matmul %64, %63, %cst_21 {dimension_numbers = #tpu.dot_dimension_numbers<[1], [0], [0], [1], [0, 0, 1, 1], [], []>} : vector<16x16xf32>, vector<16x32xf32>, vector<16x32xf32> -> vector<16x32xf32>
    %66 = math.tanh %65 : vector<16x32xf32>
    %67 = vector.broadcast %5 : vector<16x1xf32> to vector<16x32xf32>
    %68 = arith.mulf %66, %67 : vector<16x32xf32>
    %c0_22 = arith.constant 0 : index
    %c0_23 = arith.constant 0 : index
    %69 = vector.load %arg10[%c0_22, %c0_23] : memref<16x32xf32, #tpu.memory_space<vmem>>, vector<16x32xf32>
    tpu.vector_store %arg10[%c0_22, %c0_23], %68 {strides = array<i32>} : memref<16x32xf32, #tpu.memory_space<vmem>>, vector<16x32xf32>,
    %c0_24 = arith.constant 0 : index
    %c0_25 = arith.constant 0 : index
    %70 = vector.load %arg10[%c0_24, %c0_25] : memref<16x32xf32, #tpu.memory_space<vmem>>, vector<16x32xf32>
    %c1 = arith.constant 1 : index
    %c0_26 = arith.constant 0 : index
    %c0_27 = arith.constant 0 : index
    %71 = vector.load %arg5[%c1, %c0_26, %c0_27] : memref<2x32x32xf32, #tpu.memory_space<vmem>>, vector<1x32x32xf32>
    %72 = vector.shape_cast %71 : vector<1x32x32xf32> to vector<32x32xf32>
    %cst_28 = arith.constant dense<0.000000e+00> : vector<16x32xf32>
    %73 = tpu.matmul %70, %72, %cst_28 {dimension_numbers = #tpu.dot_dimension_numbers<[1], [0], [0], [1], [0, 0, 1, 1], [], []>} : vector<16x32xf32>, vector<32x32xf32>, vector<16x32xf32> -> vector<16x32xf32>
    %74 = vector.broadcast %5 : vector<16x1xf32> to vector<16x32xf32>
    %75 = arith.mulf %73, %74 : vector<16x32xf32>
    %c0_29 = arith.constant 0 : index
    %c0_30 = arith.constant 0 : index
    %76 = vector.load %arg11[%c0_29, %c0_30] : memref<16x16xf32, #tpu.memory_space<vmem>>, vector<16x16xf32>
    %cst_31 = arith.constant dense<0.000000e+00> : vector<16x32xf32>
    %77 = tpu.matmul %76, %75, %cst_31 {dimension_numbers = #tpu.dot_dimension_numbers<[1], [0], [0], [1], [0, 0, 1, 1], [], []>} : vector<16x16xf32>, vector<16x32xf32>, vector<16x32xf32> -> vector<16x32xf32>
    %78 = math.tanh %77 : vector<16x32xf32>
    %79 = vector.broadcast %5 : vector<16x1xf32> to vector<16x32xf32>
    %80 = arith.mulf %78, %79 : vector<16x32xf32>
    %c0_32 = arith.constant 0 : index
    %c0_33 = arith.constant 0 : index
    %81 = vector.load %arg10[%c0_32, %c0_33] : memref<16x32xf32, #tpu.memory_space<vmem>>, vector<16x32xf32>
    tpu.vector_store %arg10[%c0_32, %c0_33], %80 {strides = array<i32>} : memref<16x32xf32, #tpu.memory_space<vmem>>, vector<16x32xf32>,
    %c0_34 = arith.constant 0 : index
    %c0_35 = arith.constant 0 : index
    %82 = vector.load %arg10[%c0_34, %c0_35] : memref<16x32xf32, #tpu.memory_space<vmem>>, vector<16x32xf32>
    %c0_36 = arith.constant 0 : index
    %c0_37 = arith.constant 0 : index
    %83 = vector.load %arg6[%c0_36, %c0_37] : memref<32x8xf32, #tpu.memory_space<vmem>>, vector<32x8xf32>
    %84 = arith.mulf %82, %82 : vector<16x32xf32>
    %cst_38 = arith.constant dense<0.000000e+00> : vector<16xf32>
    %85 = vector.multi_reduction <add>, %84, %cst_38 [1] : vector<16x32xf32> to vector<16xf32>
    %86 = vector.shape_cast %85 : vector<16xf32> to vector<16x1xf32>
    %87 = arith.mulf %83, %83 : vector<32x8xf32>
    %cst_39 = arith.constant dense<0.000000e+00> : vector<8xf32>
    %88 = vector.multi_reduction <add>, %87, %cst_39 [0] : vector<32x8xf32> to vector<8xf32>
    %89 = vector.shape_cast %88 : vector<8xf32> to vector<1x8xf32>
    %cst_40 = arith.constant dense<0.000000e+00> : vector<16x8xf32>
    %90 = tpu.matmul %82, %83, %cst_40 {dimension_numbers = #tpu.dot_dimension_numbers<[1], [0], [0], [1], [0, 0, 1, 1], [], []>} : vector<16x32xf32>, vector<32x8xf32>, vector<16x8xf32> -> vector<16x8xf32>
    %91 = vector.broadcast %86 : vector<16x1xf32> to vector<16x8xf32>
    %92 = vector.broadcast %89 : vector<1x8xf32> to vector<16x8xf32>
    %93 = arith.addf %91, %92 : vector<16x8xf32>
    %cst_41 = arith.constant 2.000000e+00 : f32
    %94 = vector.broadcast %cst_41 : f32 to vector<16x8xf32>
    %95 = arith.mulf %94, %90 : vector<16x8xf32>
    %96 = arith.subf %93, %95 : vector<16x8xf32>
    %cst_42 = arith.constant 0.000000e+00 : f32
    %97 = vector.broadcast %cst_42 : f32 to vector<16x8xf32>
    %98 = arith.maximumf %96, %97 : vector<16x8xf32>
    %99 = math.sqrt %98 : vector<16x8xf32>
    %cst_43 = arith.constant dense<0.000000e+00> : vector<1x8xf32>
    %100 = tpu.matmul %10, %99, %cst_43 {dimension_numbers = #tpu.dot_dimension_numbers<[1], [0], [0], [1], [0, 0, 1, 1], [], []>} : vector<1x16xf32>, vector<16x8xf32>, vector<1x8xf32> -> vector<1x8xf32>
    %cst_44 = arith.constant dense<0.000000e+00> : vector<1xf32>
    %101 = vector.multi_reduction <add>, %10, %cst_44 [1] : vector<1x16xf32> to vector<1xf32>
    %102 = vector.shape_cast %101 : vector<1xf32> to vector<1x1xf32>
    %cst_45 = arith.constant 1.000000e+00 : f32
    %103 = vector.broadcast %cst_45 : f32 to vector<1x1xf32>
    %104 = arith.maximumf %102, %103 : vector<1x1xf32>
    %105 = tpu.reciprocal %104 : vector<1x1xf32> -> vector<1x1xf32>
    %106 = vector.broadcast %105 : vector<1x1xf32> to vector<1x8xf32>
    %107 = arith.mulf %100, %106 : vector<1x8xf32>
    %c0_46 = arith.constant 0 : index
    %c0_47 = arith.constant 0 : index
    %108 = vector.load %arg7[%c0_46, %c0_47] : memref<8x4xf32, #tpu.memory_space<vmem>>, vector<8x4xf32>
    %cst_48 = arith.constant dense<0.000000e+00> : vector<1x4xf32>
    %109 = tpu.matmul %107, %108, %cst_48 {dimension_numbers = #tpu.dot_dimension_numbers<[1], [0], [0], [1], [0, 0, 1, 1], [], []>} : vector<1x8xf32>, vector<8x4xf32>, vector<1x4xf32> -> vector<1x4xf32>
    %c0_49 = arith.constant 0 : index
    %c0_50 = arith.constant 0 : index
    %110 = vector.load %arg8[%c0_49, %c0_50] : memref<1x4xf32, #tpu.memory_space<vmem>>, vector<1x4xf32>
    %111 = arith.addf %109, %110 : vector<1x4xf32>
    %c0_51 = arith.constant 0 : index
    %c0_52 = arith.constant 0 : index
    %112 = vector.load %arg9[%c0_51, %c0_52] : memref<1x4xf32, #tpu.memory_space<vmem>>, vector<1x4xf32>
    tpu.vector_store %arg9[%c0_51, %c0_52], %111 {strides = array<i32>} : memref<1x4xf32, #tpu.memory_space<vmem>>, vector<1x4xf32>,
    return
  }
}

</mosaic_0001>

<llo_original>
// kernel: tpu_custom_call.1
$region0: #{tpu_custom_call.1}
  #allocation0 [shape = 'u32[]', space=smem, size = 0x4, offset = 0x4, fixed_abs, tag = 'smem constant byte address 0x4 - core index']
  #allocation1 [shape = 'u32[72,128]{1,0:T(1,128)}', space=vmem, size = 0x9000, scoped, tag = 'internal scratch']
  #allocation2 [shape = 'f32[16,32]{1,0:T(8,128)}', space=vmem, size = 0x2000, scoped, tag = 'scratch operand']
  #allocation3 [shape = 'f32[16,16]{1,0:T(8,128)}', space=vmem, size = 0x2000, scoped, tag = 'scratch operand']
  #allocation4 [shape = 's32[1]{0:T(128)S(6)}', space=smem, size = 0x200, scoped, tag = 'scoped memory for tpu_custom_call.1']
  %s0 = inlined_call_operand.<no memory space> [shape: s32[1], index: 0, kind: input, shape index: {}]
  %s1 = inlined_call_operand.vmem [shape: f32[16,8], index: 1, kind: input, shape index: {}]
  %s2 = inlined_call_operand.vmem [shape: s32[16,4], index: 2, kind: input, shape index: {}]
  %s3 = inlined_call_operand.vmem [shape: f32[16,4], index: 3, kind: input, shape index: {}]
  %s4 = inlined_call_operand.vmem [shape: f32[8,32], index: 4, kind: input, shape index: {}]
  %s5 = inlined_call_operand.hbm [shape: f32[2,32,32], index: 5, kind: input, shape index: {}]
  %s6 = inlined_call_operand.vmem [shape: f32[32,8], index: 6, kind: input, shape index: {}]
  %s7 = inlined_call_operand.vmem [shape: f32[8,4], index: 7, kind: input, shape index: {}]
  %s8 = inlined_call_operand.vmem [shape: f32[1,4], index: 8, kind: input, shape index: {}]
  %s9 = inlined_call_operand.hbm [shape: f32[1,4], index: 9, kind: output, shape index: {}]
  %s10 = sld [smem:[#allocation0]]
  $region50: #{tpu_custom_call.1} parent=0
    _
  %s12 = ssub.s32 1, %s10
  %s13 = scalar_select 0, %s12, %s10
  %14 = sst [smem:[#allocation4]] %s0
  $region1: #{tpu_custom_call.1} parent=0
    #allocation5 [shape = 'u8[32768]{0}', space=vmem, size = 0x8000, scoped, tag = 'input window, operand 5, single buffered']
    #allocation6 [shape = 's32[1]{0}', space=sflag, size = 0x4, scoped, tag = 'scoped memory for tpu_custom_call.1']
    #allocation7 [shape = 's32[1]{0}', space=sflag, size = 0x4, scoped, tag = 'scoped memory for tpu_custom_call.1']
    #allocation8 [shape = 'u8[512]{0}', space=vmem, size = 0x400, scoped, tag = 'output window, operand 0, single buffered']
    %15 = vsyncpa [#allocation6], 0
    %16 = vsyncpa [#allocation7], 0
    // Predicated region
    $region2: #{tpu_custom_call.1} parent=1 // pred_check
      _
    $region3: #{tpu_custom_call.1} parent=1 // pred_check_branch
      %18 = sbr.rel (0) target = $region5
    $region4: #{tpu_custom_call.1} parent=1 // pred_region
      _
    $region5: #{tpu_custom_call.1} parent=1 // pred_fallthru
      _
    // Predicated region
    $region6: #{tpu_custom_call.1} parent=1 // pred_check
      _
    $region7: #{tpu_custom_call.1} parent=1 // pred_check_branch
      %20 = sbr.rel (0) target = $region9
    $region8: #{tpu_custom_call.1} parent=1 // pred_region
      _
    $region9: #{tpu_custom_call.1} parent=1 // pred_fallthru
      _
    // Predicated region
    $region10: #{tpu_custom_call.1} parent=1 // pred_check
      _
    $region11: #{tpu_custom_call.1} parent=1 // pred_check_branch
      %22 = sbr.rel (0) target = $region13
    $region12: #{tpu_custom_call.1} parent=1 // pred_region
      _
    $region13: #{tpu_custom_call.1} parent=1 // pred_fallthru
      _
    // Predicated region
    $region14: #{tpu_custom_call.1} parent=1 // pred_check
      _
    $region15: #{tpu_custom_call.1} parent=1 // pred_check_branch
      %24 = sbr.rel (0) target = $region17
    $region16: #{tpu_custom_call.1} parent=1 // pred_region
      _
    $region17: #{tpu_custom_call.1} parent=1 // pred_fallthru
      _
    // Predicated region
    $region18: #{tpu_custom_call.1} parent=1 // pred_check
      _
    $region19: #{tpu_custom_call.1} parent=1 // pred_check_branch
      %26 = sbr.rel (0) target = $region21
    $region20: #{tpu_custom_call.1} parent=1 // pred_region
      _
    $region21: #{tpu_custom_call.1} parent=1 // pred_fallthru
      _
    // Predicated region
    $region22: #{tpu_custom_call.1} parent=1 // pred_check
      _
    $region23: #{tpu_custom_call.1} parent=1 // pred_check_branch
      %28 = sbr.rel (0) target = $region25
    $region24: #{tpu_custom_call.1} parent=1 // pred_region
      %30 = vsyncadd [#allocation6], 0
      %s31 = sshll.u32 %s5, 4
      %s32 = int_to_ptr.hbm [resolvable:$true] %s31
      %s33 = sshll.u32 [#allocation5], 4
      %s34 = int_to_ptr.vmem [resolvable:$true] %s33
      %39 = dma.hbm_to_vmem [thread:$0]  %s32, 1024, %s34, [#allocation6], 128, 128, 8
    $region25: #{tpu_custom_call.1} parent=1 // pred_fallthru
      _
    // Predicated region
    $region26: #{tpu_custom_call.1} parent=1 // pred_check
      _
    $region27: #{tpu_custom_call.1} parent=1 // pred_check_branch
      %41 = sbr.rel (0) target = $region29
    $region28: #{tpu_custom_call.1} parent=1 // pred_region
      _
    $region29: #{tpu_custom_call.1} parent=1 // pred_fallthru
      _
    // Predicated region
    $region30: #{tpu_custom_call.1} parent=1 // pred_check
      _
    $region31: #{tpu_custom_call.1} parent=1 // pred_check_branch
      %43 = sbr.rel (0) target = $region33
    $region32: #{tpu_custom_call.1} parent=1 // pred_region
      _
    $region33: #{tpu_custom_call.1} parent=1 // pred_fallthru
      _
    // Predicated region
    $region34: #{tpu_custom_call.1} parent=1 // pred_check
      _
    $region35: #{tpu_custom_call.1} parent=1 // pred_check_branch
      %45 = sbr.rel (0) target = $region37
    $region36: #{tpu_custom_call.1} parent=1 // pred_region
      _
    $region37: #{tpu_custom_call.1} parent=1 // pred_fallthru
      _
    // Predicated region
    $region38: #{tpu_custom_call.1} parent=1 // pred_check
      _
    $region39: #{tpu_custom_call.1} parent=1 // pred_check_branch
      %47 = sbr.rel (0) target = $region41
    $region40: #{tpu_custom_call.1} parent=1 // pred_region
      %49 = dma.done [#allocation6], 1024
    $region41: #{tpu_custom_call.1} parent=1 // pred_fallthru
      _
    %s50 = sld [smem:[#allocation4]]
    %v51 = vlaneseq
    %v52 = vshrl.u32 %v51, 7
    %v53 = vadd.s32 %v52, 8
    %v54 = vstv %s50
    %vm55 = vcmp.lt.s32.totalorder %v52, %v54
    %vm56 = vcmp.lt.s32.totalorder %v53, %v54
    %v57 = vsel %vm55, 1, 0
    %v58 = vsel %vm56, 1, 0
    %v59 = vcvt.s32.f32 %v57
    %v60 = vcvt.s32.f32 %v58
    %v61 = vlaneseq
    %v62 = vand.u32 %v61, 127
    %vm63 = vcmp.lt.s32.totalorder %v62, %v54
    %v64 = vsel %vm63, 1, 0
    %v65 = vcvt.s32.f32 %v64
    %v66 = vld [vmem:[%s2] sm:$0xff]
    %v67 = vld [vmem:[%s2 + $0x8] sm:$0xff]
    %v68 = vld [vmem:[%s3] sm:$0xff]
    %v69 = vld [vmem:[%s3 + $0x8] sm:$0xff]
    %70 = vset.pattern.permute.xlu0 0
    %71 = vperm.xlu0 %70, %v66
    %v72 = vpop.permute.xlu0 %71
    %73 = vset.pattern.permute.xlu0 0
    %74 = vperm.xlu0 %73, %v67
    %v75 = vpop.permute.xlu0 %74
    %vm76 = vcmp.eq.s32.totalorder %v72, %v62
    %vm77 = vcmp.eq.s32.totalorder %v75, %v62
    %v78 = vsel %vm76, 1, 0
    %v79 = vsel %vm77, 1, 0
    %v80 = vcvt.s32.f32 %v78
    %v81 = vcvt.s32.f32 %v79
    %83 = vset.pattern.permute.xlu0 0
    %84 = vperm.xlu0 %83, %v68
    %v85 = vpop.permute.xlu0 %84
    %88 = vset.pattern.permute.xlu0 0
    %89 = vperm.xlu0 %88, %v69
    %v90 = vpop.permute.xlu0 %89
    %v92 = vmul.f32 %v85, %v80
    %v93 = vmul.f32 %v90, %v81
    %v94 = vadd.f32 %v92, 0.0
    %v95 = vadd.f32 %v93, 0.0
    %96 = vset.pattern.permute.xlu0 1
    %97 = vperm.xlu0 %96, %v66
    %v98 = vpop.permute.xlu0 %97
    %99 = vset.pattern.permute.xlu0 1
    %100 = vperm.xlu0 %99, %v67
    %v101 = vpop.permute.xlu0 %100
    %vm102 = vcmp.eq.s32.totalorder %v98, %v62
    %vm103 = vcmp.eq.s32.totalorder %v101, %v62
    %v104 = vsel %vm102, 1, 0
    %v105 = vsel %vm103, 1, 0
    %v106 = vcvt.s32.f32 %v104
    %v107 = vcvt.s32.f32 %v105
    %108 = vset.pattern.permute.xlu0 1
    %109 = vperm.xlu0 %108, %v68
    %v110 = vpop.permute.xlu0 %109
    %112 = vset.pattern.permute.xlu0 1
    %113 = vperm.xlu0 %112, %v69
    %v114 = vpop.permute.xlu0 %113
    %v116 = vmul.f32 %v110, %v106
    %v117 = vmul.f32 %v114, %v107
    %v118 = vadd.f32 %v94, %v116
    %v119 = vadd.f32 %v95, %v117
    %120 = vset.pattern.permute.xlu0 2
    %121 = vperm.xlu0 %120, %v66
    %v122 = vpop.permute.xlu0 %121
    %123 = vset.pattern.permute.xlu0 2
    %124 = vperm.xlu0 %123, %v67
    %v125 = vpop.permute.xlu0 %124
    %vm126 = vcmp.eq.s32.totalorder %v122, %v62
    %vm127 = vcmp.eq.s32.totalorder %v125, %v62
    %v128 = vsel %vm126, 1, 0
    %v129 = vsel %vm127, 1, 0
    %v130 = vcvt.s32.f32 %v128
    %v131 = vcvt.s32.f32 %v129
    %132 = vset.pattern.permute.xlu0 2
    %133 = vperm.xlu0 %132, %v68
    %v134 = vpop.permute.xlu0 %133
    %136 = vset.pattern.permute.xlu0 2
    %137 = vperm.xlu0 %136, %v69
    %v138 = vpop.permute.xlu0 %137
    %v140 = vmul.f32 %v134, %v130
    %v141 = vmul.f32 %v138, %v131
    %v142 = vadd.f32 %v118, %v140
    %v143 = vadd.f32 %v119, %v141
    %144 = vset.pattern.permute.xlu0 3
    %145 = vperm.xlu0 %144, %v66
    %v146 = vpop.permute.xlu0 %145
    %147 = vset.pattern.permute.xlu0 3
    %148 = vperm.xlu0 %147, %v67
    %v149 = vpop.permute.xlu0 %148
    %vm150 = vcmp.eq.s32.totalorder %v146, %v62
    %vm151 = vcmp.eq.s32.totalorder %v149, %v62
    %v152 = vsel %vm150, 1, 0
    %v153 = vsel %vm151, 1, 0
    %v154 = vcvt.s32.f32 %v152
    %v155 = vcvt.s32.f32 %v153
    %156 = vset.pattern.permute.xlu0 3
    %157 = vperm.xlu0 %156, %v68
    %v158 = vpop.permute.xlu0 %157
    %160 = vset.pattern.permute.xlu0 3
    %161 = vperm.xlu0 %160, %v69
    %v162 = vpop.permute.xlu0 %161
    %v164 = vmul.f32 %v158, %v154
    %v165 = vmul.f32 %v162, %v155
    %v166 = vadd.f32 %v142, %v164
    %v167 = vadd.f32 %v143, %v165
    %vm168 = vcmask 130048
    %169 = vst.msk [vmem:[#allocation3] sm:$0xff] %vm168, %v166
    %170 = vst.msk [vmem:[#allocation3 + $0x8] sm:$0xff] %vm168, %v167
    %v171 = vld [vmem:[%s1] sm:$0xff]
    %v172 = vld [vmem:[%s1 + $0x8] sm:$0xff]
    %v173 = vld [vmem:[%s4] sm:$0xff]
    %vm174 = vcmask 64512
    %v176 = vsel %vm174, %v171, 0
    %v179 = vsel %vm174, %v172, 0
    %181 = vmatpush.msra.mxu0 0.0
    %182 = vmatpush.msra.mxu0 0.0
    %183 = vmatpush.msra.mxu0 0.0
    %184 = vmatpush.msra.mxu0 0.0
    %185 = vmatpush.msra.mxu0 0.0
    %186 = vmatpush.msra.mxu0 0.0
    %187 = vmatpush.msra.mxu0 0.0
    %188 = vmatpush.msra.mxu0 0.0
    %189 = vmatpush.msra.mxu0 0.0
    %190 = vmatpush.msra.mxu0 0.0
    %191 = vmatpush.msra.mxu0 0.0
    %192 = vmatpush.msra.mxu0 0.0
    %193 = vmatpush.msra.mxu0 0.0
    %194 = vmatpush.msra.mxu0 0.0
    %195 = vmatpush.msra.mxu0 0.0
    %196 = vmatpush.msra.mxu0 %v173
    %197 = vmatmul.f32.gmra.mxu0 %v176
    %v198 = vpop.f32.mrf.mxu0
    %v199 = vadd.f32 0.0, %v198
    %200 = vmatmul.f32.gmra.mxu0 %v179
    %v201 = vpop.f32.mrf.mxu0
    %v202 = vadd.f32 0.0, %v201
    %203 = vdwg.mxu0
    %v204 = vmul.f32 %v199, %v59
    %v205 = vmul.f32 %v202, %v60
    %vm206 = vcmask 261120
    %207 = vst.msk [vmem:[#allocation2] sm:$0xff] %vm206, %v204
    %208 = vst.msk [vmem:[#allocation2 + $0x8] sm:$0xff] %vm206, %v205
    %v209 = vld [vmem:[#allocation2] sm:$0xff]
    %v210 = vld [vmem:[#allocation2 + $0x8] sm:$0xff]
    %v211 = vld [vmem:[#allocation5] sm:$0xff]
    %v212 = vld [vmem:[#allocation5 + $0x8] sm:$0xff]
    %v213 = vld [vmem:[#allocation5 + $0x10] sm:$0xff]
    %v214 = vld [vmem:[#allocation5 + $0x18] sm:$0xff]
    %v216 = vsel %vm206, %v209, 0
    %v219 = vsel %vm206, %v210, 0
    %221 = vmatpush.msra.mxu0 0.0
    %222 = vmatpush.msra.mxu0 0.0
    %223 = vmatpush.msra.mxu0 0.0
    %224 = vmatpush.msra.mxu0 0.0
    %225 = vmatpush.msra.mxu0 0.0
    %226 = vmatpush.msra.mxu0 0.0
    %227 = vmatpush.msra.mxu0 0.0
    %228 = vmatpush.msra.mxu0 0.0
    %229 = vmatpush.msra.mxu0 0.0
    %230 = vmatpush.msra.mxu0 0.0
    %231 = vmatpush.msra.mxu0 0.0
    %232 = vmatpush.msra.mxu0 0.0
    %233 = vmatpush.msra.mxu0 %v214
    %234 = vmatpush.msra.mxu0 %v213
    %235 = vmatpush.msra.mxu0 %v212
    %236 = vmatpush.msra.mxu0 %v211
    %237 = vmatmul.f32.gmra.mxu0 %v216
    %v238 = vpop.f32.mrf.mxu0
    %v239 = vadd.f32 0.0, %v238
    %240 = vmatmul.f32.gmra.mxu0 %v219
    %v241 = vpop.f32.mrf.mxu0
    %v242 = vadd.f32 0.0, %v241
    %243 = vdwg.mxu0
    %v244 = vmul.f32 %v239, %v59
    %v245 = vmul.f32 %v242, %v60
    %v246 = vld [vmem:[#allocation3] sm:$0xff]
    %v247 = vld [vmem:[#allocation3 + $0x8] sm:$0xff]
    %v249 = vsel %vm168, %v246, 0
    %v252 = vsel %vm168, %v247, 0
    %254 = vmatpush.msra.mxu0 0.0
    %255 = vmatpush.msra.mxu0 0.0
    %256 = vmatpush.msra.mxu0 0.0
    %257 = vmatpush.msra.mxu0 0.0
    %258 = vmatpush.msra.mxu0 0.0
    %259 = vmatpush.msra.mxu0 0.0
    %260 = vmatpush.msra.mxu0 0.0
    %261 = vmatpush.msra.mxu0 0.0
    %262 = vmatpush.msra.mxu0 0.0
    %263 = vmatpush.msra.mxu0 0.0
    %264 = vmatpush.msra.mxu0 0.0
    %265 = vmatpush.msra.mxu0 0.0
    %266 = vmatpush.msra.mxu0 0.0
    %267 = vmatpush.msra.mxu0 0.0
    %268 = vmatpush.msra.mxu0 %v245
    %269 = vmatpush.msra.mxu0 %v244
    %270 = vmatmul.f32.gmra.mxu0 %v249
    %v271 = vpop.f32.mrf.mxu0
    %v272 = vadd.f32 0.0, %v271
    %273 = vmatmul.f32.gmra.mxu0 %v252
    %v274 = vpop.f32.mrf.mxu0
    %v275 = vadd.f32 0.0, %v274
    %276 = vdwg.mxu0
    %v277 = vtanh.pop %v272
    %v278 = vtanh.pop %v275
    %v279 = vmul.f32 %v277, %v59
    %v280 = vmul.f32 %v278, %v60
    %281 = vst.msk [vmem:[#allocation2] sm:$0xff] %vm206, %v279
    %282 = vst.msk [vmem:[#allocation2 + $0x8] sm:$0xff] %vm206, %v280
    %v283 = vld [vmem:[#allocation2] sm:$0xff]
    %v284 = vld [vmem:[#allocation2 + $0x8] sm:$0xff]
    %s285 = scalar_lea.vmem [#allocation5], 32
    %v286 = vld [vmem:[%s285] sm:$0xff]
    %v287 = vld [vmem:[%s285 + $0x8] sm:$0xff]
    %v288 = vld [vmem:[%s285 + $0x10] sm:$0xff]
    %v289 = vld [vmem:[%s285 + $0x18] sm:$0xff]
    %v291 = vsel %vm206, %v283, 0
    %v294 = vsel %vm206, %v284, 0
    %296 = vmatpush.msra.mxu0 0.0
    %297 = vmatpush.msra.mxu0 0.0
    %298 = vmatpush.msra.mxu0 0.0
    %299 = vmatpush.msra.mxu0 0.0
    %300 = vmatpush.msra.mxu0 0.0
    %301 = vmatpush.msra.mxu0 0.0
    %302 = vmatpush.msra.mxu0 0.0
    %303 = vmatpush.msra.mxu0 0.0
    %304 = vmatpush.msra.mxu0 0.0
    %305 = vmatpush.msra.mxu0 0.0
    %306 = vmatpush.msra.mxu0 0.0
    %307 = vmatpush.msra.mxu0 0.0
    %308 = vmatpush.msra.mxu0 %v289
    %309 = vmatpush.msra.mxu0 %v288
    %310 = vmatpush.msra.mxu0 %v287
    %311 = vmatpush.msra.mxu0 %v286
    %312 = vmatmul.f32.gmra.mxu0 %v291
    %v313 = vpop.f32.mrf.mxu0
    %v314 = vadd.f32 0.0, %v313
    %315 = vmatmul.f32.gmra.mxu0 %v294
    %v316 = vpop.f32.mrf.mxu0
    %v317 = vadd.f32 0.0, %v316
    %318 = vdwg.mxu0
    %v319 = vmul.f32 %v314, %v59
    %v320 = vmul.f32 %v317, %v60
    %v321 = vld [vmem:[#allocation3] sm:$0xff]
    %v322 = vld [vmem:[#allocation3 + $0x8] sm:$0xff]
    %v324 = vsel %vm168, %v321, 0
    %v327 = vsel %vm168, %v322, 0
    %329 = vmatpush.msra.mxu0 0.0
    %330 = vmatpush.msra.mxu0 0.0
    %331 = vmatpush.msra.mxu0 0.0
    %332 = vmatpush.msra.mxu0 0.0
    %333 = vmatpush.msra.mxu0 0.0
    %334 = vmatpush.msra.mxu0 0.0
    %335 = vmatpush.msra.mxu0 0.0
    %336 = vmatpush.msra.mxu0 0.0
    %337 = vmatpush.msra.mxu0 0.0
    %338 = vmatpush.msra.mxu0 0.0
    %339 = vmatpush.msra.mxu0 0.0
    %340 = vmatpush.msra.mxu0 0.0
    %341 = vmatpush.msra.mxu0 0.0
    %342 = vmatpush.msra.mxu0 0.0
    %343 = vmatpush.msra.mxu0 %v320
    %344 = vmatpush.msra.mxu0 %v319
    %345 = vmatmul.f32.gmra.mxu0 %v324
    %v346 = vpop.f32.mrf.mxu0
    %v347 = vadd.f32 0.0, %v346
    %348 = vmatmul.f32.gmra.mxu0 %v327
    %v349 = vpop.f32.mrf.mxu0
    %v350 = vadd.f32 0.0, %v349
    %351 = vdwg.mxu0
    %v352 = vtanh.pop %v347
    %v353 = vtanh.pop %v350
    %v354 = vmul.f32 %v352, %v59
    %v355 = vmul.f32 %v353, %v60
    %356 = vst.msk [vmem:[#allocation2] sm:$0xff] %vm206, %v354
    %357 = vst.msk [vmem:[#allocation2 + $0x8] sm:$0xff] %vm206, %v355
    %v358 = vld [vmem:[#allocation2] sm:$0xff]
    %v359 = vld [vmem:[#allocation2 + $0x8] sm:$0xff]
    %v360 = vld [vmem:[%s6] sm:$0xff]
    %v361 = vld [vmem:[%s6 + $0x8] sm:$0xff]
    %v362 = vld [vmem:[%s6 + $0x10] sm:$0xff]
    %v363 = vld [vmem:[%s6 + $0x18] sm:$0xff]
    %v364 = vmul.f32 %v358, %v358
    %v365 = vmul.f32 %v359, %v359
    %v366 = vsel %vm206, %v364, 0.0
    %367 = vadd.xlane.f32.xlu0 %v366
    %v368 = vpop.xlane.xlu0 %367
    %v369 = vsel %vm206, %v365, 0.0
    %370 = vadd.xlane.f32.xlu0 %v369
    %v371 = vpop.xlane.xlu0 %370
    %v372 = vmul.f32 %v360, %v360
    %v373 = vmul.f32 %v361, %v361
    %v374 = vmul.f32 %v362, %v362
    %v375 = vmul.f32 %v363, %v363
    %v376 = vsel %vm174, %v372, 0.0
    %v377 = vsel %vm174, %v373, 0.0
    %v378 = vadd.f32 %v376, %v377
    %v379 = vsel %vm174, %v374, 0.0
    %v380 = vadd.f32 %v378, %v379
    %v381 = vsel %vm174, %v375, 0.0
    %v382 = vadd.f32 %v380, %v381
    %v383 = vrot.slane %v382, 4
    %v384 = vadd.f32 %v382, %v383
    %v385 = vrot.slane %v384, 2
    %v386 = vadd.f32 %v384, %v385
    %v387 = vrot.slane %v386, 1
    %v388 = vadd.f32 %v386, %v387
    %v390 = vsel %vm206, %v358, 0
    %v393 = vsel %vm206, %v359, 0
    %395 = vmatpush.msra.mxu0 0.0
    %396 = vmatpush.msra.mxu0 0.0
    %397 = vmatpush.msra.mxu0 0.0
    %398 = vmatpush.msra.mxu0 0.0
    %399 = vmatpush.msra.mxu0 0.0
    %400 = vmatpush.msra.mxu0 0.0
    %401 = vmatpush.msra.mxu0 0.0
    %402 = vmatpush.msra.mxu0 0.0
    %403 = vmatpush.msra.mxu0 0.0
    %404 = vmatpush.msra.mxu0 0.0
    %405 = vmatpush.msra.mxu0 0.0
    %406 = vmatpush.msra.mxu0 0.0
    %407 = vmatpush.msra.mxu0 %v363
    %408 = vmatpush.msra.mxu0 %v362
    %409 = vmatpush.msra.mxu0 %v361
    %410 = vmatpush.msra.mxu0 %v360
    %411 = vmatmul.f32.gmra.mxu0 %v390
    %v412 = vpop.f32.mrf.mxu0
    %v413 = vadd.f32 0.0, %v412
    %414 = vmatmul.f32.gmra.mxu0 %v393
    %v415 = vpop.f32.mrf.mxu0
    %v416 = vadd.f32 0.0, %v415
    %417 = vdwg.mxu0
    %v418 = vadd.f32 %v368, %v388
    %v419 = vadd.f32 %v371, %v388
    %v420 = vmul.f32 %v413, 2.0
    %v421 = vmul.f32 %v416, 2.0
    %v422 = vsub.f32 %v418, %v420
    %v423 = vsub.f32 %v419, %v421
    %v424 = vmax.f32 %v422, 0.0
    %v425 = vmax.f32 %v423, 0.0
    %v426 = vrsqrt.pop %v424
    %v427 = vmul.f32 %v426, %v424
    %v428 = vmul.f32 %v427, %v426
    %v429 = vmul.f32 0.5, %v428
    %v430 = vsub.f32 1.5, %v429
    %v431 = vmul.f32 %v426, %v430
    %v432 = vmul.f32 %v424, %v431
    %vm433 = vcmp.eq.f32.partialorder %v424, inf
    %v434 = vsel %vm433, %v424, %v432
    %vm435 = vcmp.eq.f32.partialorder %v424, 0.0
    %v436 = vand.u32 %v424, 2147483648
    %v437 = vsel %vm435, %v436, %v434
    %v438 = vrsqrt.pop %v425
    %v439 = vmul.f32 %v438, %v425
    %v440 = vmul.f32 %v439, %v438
    %v441 = vmul.f32 0.5, %v440
    %v442 = vsub.f32 1.5, %v441
    %v443 = vmul.f32 %v438, %v442
    %v444 = vmul.f32 %v425, %v443
    %vm445 = vcmp.eq.f32.partialorder %v425, inf
    %v446 = vsel %vm445, %v425, %v444
    %vm447 = vcmp.eq.f32.partialorder %v425, 0.0
    %v448 = vand.u32 %v425, 2147483648
    %v449 = vsel %vm447, %v448, %v446
    %v451 = vsel %vm168, %v65, 0
    %453 = vmatpush.msra.mxu0 0.0
    %454 = vmatpush.msra.mxu0 0.0
    %455 = vmatpush.msra.mxu0 0.0
    %456 = vmatpush.msra.mxu0 0.0
    %457 = vmatpush.msra.mxu0 0.0
    %458 = vmatpush.msra.mxu0 0.0
    %459 = vmatpush.msra.mxu0 0.0
    %460 = vmatpush.msra.mxu0 0.0
    %461 = vmatpush.msra.mxu0 0.0
    %462 = vmatpush.msra.mxu0 0.0
    %463 = vmatpush.msra.mxu0 0.0
    %464 = vmatpush.msra.mxu0 0.0
    %465 = vmatpush.msra.mxu0 0.0
    %466 = vmatpush.msra.mxu0 0.0
    %467 = vmatpush.msra.mxu0 %v449
    %468 = vmatpush.msra.mxu0 %v437
    %469 = vmatmul.f32.gmra.mxu0 %v451
    %v470 = vpop.f32.mrf.mxu0
    %v471 = vadd.f32 0.0, %v470
    %472 = vdwg.mxu0
    %v473 = vsel %vm168, %v65, 0.0
    %474 = vadd.xlane.f32.xlu0 %v473
    %v475 = vpop.xlane.xlu0 %474
    %v476 = vmax.f32 %v475, 1.0
    %v477 = vrcp.pop %v476
    %v478 = vmul.f32 %v476, %v477
    %v479 = vsub.f32 1.0, %v478
    %v480 = vmul.f32 %v477, %v479
    %v481 = vadd.f32 %v477, %v480
    %vm482 = vweird.f32 %v476
    %vm483 = vweird.f32 %v477
    %vm484 = vmor %vm482, %vm483
    %v485 = vsel %vm484, %v477, %v481
    %v486 = vand.u32 2147483647, %v476
    %vm487 = vcmp.eq.f32.partialorder %v486, 8.507059e+37
    %v488 = vand.u32 %v476, 2147483648
    %v489 = vor.u32 1.1754944e-38, %v488
    %v490 = vsel %vm487, %v489, %v485
    %v491 = vmul.f32 %v471, %v490
    %v492 = vld [vmem:[%s7] sm:$0xff]
    %v493 = vld [vmem:[%s8] sm:$0x1]
    %v495 = vsel %vm174, %v491, 0
    %497 = vmatpush.msra.mxu0 0.0
    %498 = vmatpush.msra.mxu0 0.0
    %499 = vmatpush.msra.mxu0 0.0
    %500 = vmatpush.msra.mxu0 0.0
    %501 = vmatpush.msra.mxu0 0.0
    %502 = vmatpush.msra.mxu0 0.0
    %503 = vmatpush.msra.mxu0 0.0
    %504 = vmatpush.msra.mxu0 0.0
    %505 = vmatpush.msra.mxu0 0.0
    %506 = vmatpush.msra.mxu0 0.0
    %507 = vmatpush.msra.mxu0 0.0
    %508 = vmatpush.msra.mxu0 0.0
    %509 = vmatpush.msra.mxu0 0.0
    %510 = vmatpush.msra.mxu0 0.0
    %511 = vmatpush.msra.mxu0 0.0
    %512 = vmatpush.msra.mxu0 %v492
    %513 = vmatmul.f32.gmra.mxu0 %v495
    %v514 = vpop.f32.mrf.mxu0
    %v515 = vadd.f32 %v493, %v514
    %516 = vdwg.mxu0
    %vm517 = vcmask 24576
    %518 = vst.msk [vmem:[#allocation8] sm:$0x1] %vm517, %v515
    // Predicated region
    $region42: #{tpu_custom_call.1} parent=1 // pred_check
      _
    $region43: #{tpu_custom_call.1} parent=1 // pred_check_branch
      %520 = sbr.rel (0) target = $region45
    $region44: #{tpu_custom_call.1} parent=1 // pred_region
      %522 = vsyncadd [#allocation7], 0
      %s524 = sshll.u32 [#allocation8], 4
      %s525 = int_to_ptr.vmem [resolvable:$true] %s524
      %s526 = sshll.u32 %s9, 4
      %s527 = int_to_ptr.hbm [resolvable:$true] %s526
      %529 = dma.vmem_to_hbm [thread:$0]  %s525, 16, %s527, [#allocation7]
    $region45: #{tpu_custom_call.1} parent=1 // pred_fallthru
      _
    // Predicated region
    $region46: #{tpu_custom_call.1} parent=1 // pred_check
      _
    $region47: #{tpu_custom_call.1} parent=1 // pred_check_branch
      %531 = sbr.rel (0) target = $region49
    $region48: #{tpu_custom_call.1} parent=1 // pred_region
      %533 = dma.done [#allocation7], 16
    $region49: #{tpu_custom_call.1} parent=1 // pred_fallthru
      _
    %534 = vsyncpa [#allocation6], 1
    %535 = vsyncpa [#allocation7], 1

</llo_original>
